<compile_context>
chip_gen: v6e
topology: v6e:2x2x1
jax: 0.10.0
libtpu: 0.0.40
codegen_flags: <defaults>
</compile_context>

<pallas_src>
import functools

import jax
import jax.numpy as jnp
from jax import lax
from jax.experimental import pallas as pl
from jax.experimental.pallas import tpu as pltpu


def _round_up(x, n):
    return pl.cdiv(x, n) * n


# ---------------------------------------------------------------------------
# Fused head kernel (per batch tile):
#   mT     = (sigmoid(le @ W^T + b) * conv_w)^T            (Z, C)  resident math
#   final  = z * sigmoid(zf)                                (TB, Z) streamed
#   p      = sigmoid(final @ mT + conv_b)                   (TB, C)
# ---------------------------------------------------------------------------
def _head_kernel(z_ref, zf_ref, leT_ref, liw_ref, lib_ref, cwT_ref, cb_ref,
                 p_ref):
    # Batch-independent class weights, recomputed per grid step (megacore-safe,
    # ~C*Z*Z MACs: free under MXU/DMA slack).
    fiT = jax.nn.sigmoid(
        lax.dot_general(liw_ref[...], leT_ref[...],
                        (((1,), (0,)), ((), ())),
                        preferred_element_type=jnp.float32)
        + lib_ref[...])                                   # (Z, C)
    mT = fiT * cwT_ref[...]                               # (Z, C)

    final = z_ref[...] * jax.nn.sigmoid(zf_ref[...])      # (TB, Z) f32
    logits = lax.dot_general(final, mT,
                             (((1,), (0,)), ((), ())),
                             preferred_element_type=jnp.float32)  # (TB, C)
    p_ref[...] = jax.nn.sigmoid(logits + cb_ref[...])


@functools.partial(jax.jit, static_argnames=("tb",))
def net_head_forward(z_sample, z_specific_fusion, label_embedding,
                     li_w, li_b, conv_w, conv_b, *, tb=2048):
    """Fused Pallas head of Net.forward. Returns p of shape (B, num_classes)."""
    B, Z = z_sample.shape
    C = label_embedding.shape[0]

    # --- batch tile selection -----------------------------------------------
    # VMEM footprint/row: 2 streamed inputs x 2 buffers x Z*4B + output 2 x C*4B.
    per_row_bytes = 2 * 2 * Z * 4 + 2 * C * 4
    vmem_budget = 8 * 1024 * 1024                 # safe under v5e's 16 MiB scoped
    tb_cap = max(8, vmem_budget // max(per_row_bytes, 1))
    TB = min(int(tb), int(_round_up(B, 8)), int(tb_cap))
    if B >= 1024:
        # Give v7x's two TensorCores work (>=2 grid steps) once B is large
        # enough that the ~0.35us/step overhead is amortized.
        TB = min(TB, int(_round_up(pl.cdiv(B, 2), 8)))
    TB = max(8, (TB // 8) * 8)                    # legal sublane tiling

    grid = (pl.cdiv(B, TB),)

    # --- tiny resident weights, matmul-ready layout (one-time, ~KB) ----------
    leT = jnp.transpose(label_embedding.astype(jnp.float32))          # (Z, C)
    liw = li_w.astype(jnp.float32)                                     # (Z, Z)
    lib = li_b.reshape(Z, 1).astype(jnp.float32)                       # (Z, 1)
    cwT = jnp.transpose(conv_w.reshape(C, Z).astype(jnp.float32))      # (Z, C)
    cb = conv_b.reshape(1, C).astype(jnp.float32)                      # (1, C)

    p = pl.pallas_call(
        _head_kernel,
        out_shape=jax.ShapeDtypeStruct((B, C), jnp.float32),
        grid=grid,
        in_specs=[
            pl.BlockSpec((TB, Z), lambda i: (i, 0)),   # z_sample (streamed, f32)
            pl.BlockSpec((TB, Z), lambda i: (i, 0)),   # z_specific_fusion
            pl.BlockSpec((Z, C), lambda i: (0, 0)),    # label_embedding^T (resident)
            pl.BlockSpec((Z, Z), lambda i: (0, 0)),    # Linear weight (resident)
            pl.BlockSpec((Z, 1), lambda i: (0, 0)),    # Linear bias (resident)
            pl.BlockSpec((Z, C), lambda i: (0, 0)),    # conv weight^T (resident)
            pl.BlockSpec((1, C), lambda i: (0, 0)),    # conv bias (resident)
        ],
        out_specs=pl.BlockSpec((TB, C), lambda i: (i, 0)),   # unpadded (B, C)
        compiler_params=pltpu.CompilerParams(
            dimension_semantics=("parallel",)),
    )(z_sample.astype(jnp.float32), z_specific_fusion.astype(jnp.float32),
      leT, liw, lib, cwT, cb)

    return p


# ---------------------------------------------------------------------------
# Pure-JAX reference (mirrors the PyTorch forward head, all f32)
# ---------------------------------------------------------------------------
def _reference(z_sample, z_specific_fusion, label_embedding,
               li_w, li_b, conv_w, conv_b):
    C = label_embedding.shape[0]
    Z = z_sample.shape[1]
    fi = jax.nn.sigmoid(label_embedding @ li_w.T + li_b[None, :])
    final = z_sample * jax.nn.sigmoid(z_specific_fusion)
    qc_z = final[:, None, :] * fi[None, :, :]
    logits = jnp.einsum("bcz,cz->bc", qc_z, conv_w.reshape(C, Z)) + conv_b[None, :]
    return jax.nn.sigmoid(logits)


if __name__ == "__main__":
    # Small test shapes (batch, num_classes, z_dim). B is not a multiple of the
    # tile so the ragged/masked last block path is exercised.
    B, C, Z = 70, 10, 32

    key = jax.random.PRNGKey(0)
    ks = jax.random.split(key, 7)
    z_sample = jax.random.normal(ks[0], (B, Z), jnp.float32)
    z_specific_fusion = jax.random.normal(ks[1], (B, Z), jnp.float32)
    label_embedding = jax.random.normal(ks[2], (C, Z), jnp.float32)
    # nn.Linear(z_dim, z_dim)
    li_w = jax.random.normal(ks[3], (Z, Z), jnp.float32) * (1.0 / jnp.sqrt(Z))
    li_b = jax.random.normal(ks[4], (Z,), jnp.float32) * 0.01
    # nn.Conv1d(C, C, kernel_size=Z, groups=C) -> weight (C, 1, Z)
    conv_w = jax.random.normal(ks[5], (C, 1, Z), jnp.float32) * (1.0 / jnp.sqrt(Z))
    conv_b = jax.random.normal(ks[6], (C,), jnp.float32) * 0.01

    p_ref = _reference(z_sample, z_specific_fusion, label_embedding,
                       li_w, li_b, conv_w, conv_b)

    # Default tile (single masked block at this size).
    p = net_head_forward(z_sample, z_specific_fusion, label_embedding,
                         li_w, li_b, conv_w, conv_b)
    p = jax.block_until_ready(p)
    assert p.shape == (B, C)
    assert jnp.allclose(p, p_ref, atol=1e-4, rtol=1e-4), float(
        jnp.max(jnp.abs(p - p_ref)))

    # Small tile so the batch grid has several steps + a ragged last block.
    p2 = net_head_forward(z_sample, z_specific_fusion, label_embedding,
                          li_w, li_b, conv_w, conv_b, tb=16)
    p2 = jax.block_until_ready(p2)
    assert jnp.allclose(p2, p_ref, atol=1e-4, rtol=1e-4), float(
        jnp.max(jnp.abs(p2 - p_ref)))

    print("KERNEL_OK")
</pallas_src>

<mosaic_0001>
module attributes {stable_mosaic.version = 11 : i64} {
  func.func @_head_kernel(%arg0: i32, %arg1: memref<72x32xf32, #tpu.memory_space<vmem>>, %arg2: memref<72x32xf32, #tpu.memory_space<vmem>>, %arg3: memref<32x10xf32, #tpu.memory_space<vmem>>, %arg4: memref<32x32xf32, #tpu.memory_space<vmem>>, %arg5: memref<32x1xf32, #tpu.memory_space<vmem>>, %arg6: memref<32x10xf32, #tpu.memory_space<vmem>>, %arg7: memref<1x10xf32, #tpu.memory_space<vmem>>, %arg8: memref<72x10xf32, #tpu.memory_space<vmem>>) attributes {dimension_semantics = [#tpu.dimension_semantics<parallel>], iteration_bounds = array<i64: 1>, scalar_prefetch = 0 : i64, scratch_operands = 0 : i64, tpu.core_type = #tpu.core_type<tc>, window_params = [{transform_indices = @transform_0, window_bounds = array<i64: 72, 32>}, {transform_indices = @transform_1, window_bounds = array<i64: 72, 32>}, {pipeline_mode = #tpu.pipeline_mode<synchronous>, transform_indices = @transform_2, window_bounds = array<i64: 32, 10>}, {pipeline_mode = #tpu.pipeline_mode<synchronous>, transform_indices = @transform_3, window_bounds = array<i64: 32, 32>}, {pipeline_mode = #tpu.pipeline_mode<synchronous>, transform_indices = @transform_4, window_bounds = array<i64: 32, 1>}, {pipeline_mode = #tpu.pipeline_mode<synchronous>, transform_indices = @transform_5, window_bounds = array<i64: 32, 10>}, {pipeline_mode = #tpu.pipeline_mode<synchronous>, transform_indices = @transform_6, window_bounds = array<i64: 1, 10>}, {transform_indices = @transform_7, window_bounds = array<i64: 72, 10>}]} {
    %c0 = arith.constant 0 : index
    %c0_0 = arith.constant 0 : index
    %0 = vector.load %arg4[%c0, %c0_0] : memref<32x32xf32, #tpu.memory_space<vmem>>, vector<32x32xf32>
    %c0_1 = arith.constant 0 : index
    %c0_2 = arith.constant 0 : index
    %1 = vector.load %arg3[%c0_1, %c0_2] : memref<32x10xf32, #tpu.memory_space<vmem>>, vector<32x10xf32>
    %cst = arith.constant dense<0.000000e+00> : vector<32x10xf32>
    %2 = tpu.matmul %0, %1, %cst {dimension_numbers = #tpu.dot_dimension_numbers<[1], [0], [0], [1], [0, 0, 1, 1], [], []>} : vector<32x32xf32>, vector<32x10xf32>, vector<32x10xf32> -> vector<32x10xf32>
    %c0_3 = arith.constant 0 : index
    %c0_4 = arith.constant 0 : index
    %3 = vector.load %arg5[%c0_3, %c0_4] : memref<32x1xf32, #tpu.memory_space<vmem>>, vector<32x1xf32>
    %4 = vector.broadcast %3 : vector<32x1xf32> to vector<32x10xf32>
    %5 = arith.addf %2, %4 : vector<32x10xf32>
    %6 = arith.negf %5 : vector<32x10xf32>
    %7 = math.exp %6 : vector<32x10xf32>
    %cst_5 = arith.constant 1.000000e+00 : f32
    %8 = vector.broadcast %cst_5 : f32 to vector<32x10xf32>
    %9 = arith.addf %8, %7 : vector<32x10xf32>
    %10 = arith.divf %8, %9 : vector<32x10xf32>
    %c0_6 = arith.constant 0 : index
    %c0_7 = arith.constant 0 : index
    %11 = vector.load %arg6[%c0_6, %c0_7] : memref<32x10xf32, #tpu.memory_space<vmem>>, vector<32x10xf32>
    %12 = arith.mulf %10, %11 : vector<32x10xf32>
    %c0_8 = arith.constant 0 : index
    %c0_9 = arith.constant 0 : index
    %13 = vector.load %arg1[%c0_8, %c0_9] : memref<72x32xf32, #tpu.memory_space<vmem>>, vector<72x32xf32>
    %c0_10 = arith.constant 0 : index
    %c0_11 = arith.constant 0 : index
    %14 = vector.load %arg2[%c0_10, %c0_11] : memref<72x32xf32, #tpu.memory_space<vmem>>, vector<72x32xf32>
    %15 = arith.negf %14 : vector<72x32xf32>
    %16 = math.exp %15 : vector<72x32xf32>
    %cst_12 = arith.constant 1.000000e+00 : f32
    %17 = vector.broadcast %cst_12 : f32 to vector<72x32xf32>
    %18 = arith.addf %17, %16 : vector<72x32xf32>
    %19 = arith.divf %17, %18 : vector<72x32xf32>
    %20 = arith.mulf %13, %19 : vector<72x32xf32>
    %cst_13 = arith.constant dense<0.000000e+00> : vector<72x10xf32>
    %21 = tpu.matmul %20, %12, %cst_13 {dimension_numbers = #tpu.dot_dimension_numbers<[1], [0], [0], [1], [0, 0, 1, 1], [], []>} : vector<72x32xf32>, vector<32x10xf32>, vector<72x10xf32> -> vector<72x10xf32>
    %c0_14 = arith.constant 0 : index
    %c0_15 = arith.constant 0 : index
    %22 = vector.load %arg7[%c0_14, %c0_15] : memref<1x10xf32, #tpu.memory_space<vmem>>, vector<1x10xf32>
    %23 = vector.broadcast %22 : vector<1x10xf32> to vector<72x10xf32>
    %24 = arith.addf %21, %23 : vector<72x10xf32>
    %25 = arith.negf %24 : vector<72x10xf32>
    %26 = math.exp %25 : vector<72x10xf32>
    %cst_16 = arith.constant 1.000000e+00 : f32
    %27 = vector.broadcast %cst_16 : f32 to vector<72x10xf32>
    %28 = arith.addf %27, %26 : vector<72x10xf32>
    %29 = arith.divf %27, %28 : vector<72x10xf32>
    %c0_17 = arith.constant 0 : index
    %c0_18 = arith.constant 0 : index
    %30 = vector.load %arg8[%c0_17, %c0_18] : memref<72x10xf32, #tpu.memory_space<vmem>>, vector<72x10xf32>
    tpu.vector_store %arg8[%c0_17, %c0_18], %29 {strides = array<i32>} : memref<72x10xf32, #tpu.memory_space<vmem>>, vector<72x10xf32>,
    return
  }
  func.func @transform_0(%arg0: i32) -> (i32, i32) {
    %c0_i32 = arith.constant 0 : i32
    %c0_i32_0 = arith.constant 0 : i32
    return %arg0, %c0_i32 : i32, i32
  }
  func.func @transform_1(%arg0: i32) -> (i32, i32) {
    %c0_i32 = arith.constant 0 : i32
    %c0_i32_0 = arith.constant 0 : i32
    return %arg0, %c0_i32 : i32, i32
  }
  func.func @transform_2(%arg0: i32) -> (i32, i32) {
    %c0_i32 = arith.constant 0 : i32
    %c0_i32_0 = arith.constant 0 : i32
    %c0_i32_1 = arith.constant 0 : i32
    return %c0_i32, %c0_i32_0 : i32, i32
  }
  func.func @transform_3(%arg0: i32) -> (i32, i32) {
    %c0_i32 = arith.constant 0 : i32
    %c0_i32_0 = arith.constant 0 : i32
    %c0_i32_1 = arith.constant 0 : i32
    return %c0_i32, %c0_i32_0 : i32, i32
  }
  func.func @transform_4(%arg0: i32) -> (i32, i32) {
    %c0_i32 = arith.constant 0 : i32
    %c0_i32_0 = arith.constant 0 : i32
    %c0_i32_1 = arith.constant 0 : i32
    return %c0_i32, %c0_i32_0 : i32, i32
  }
  func.func @transform_5(%arg0: i32) -> (i32, i32) {
    %c0_i32 = arith.constant 0 : i32
    %c0_i32_0 = arith.constant 0 : i32
    %c0_i32_1 = arith.constant 0 : i32
    return %c0_i32, %c0_i32_0 : i32, i32
  }
  func.func @transform_6(%arg0: i32) -> (i32, i32) {
    %c0_i32 = arith.constant 0 : i32
    %c0_i32_0 = arith.constant 0 : i32
    %c0_i32_1 = arith.constant 0 : i32
    return %c0_i32, %c0_i32_0 : i32, i32
  }
  func.func @transform_7(%arg0: i32) -> (i32, i32) {
    %c0_i32 = arith.constant 0 : i32
    %c0_i32_0 = arith.constant 0 : i32
    return %arg0, %c0_i32 : i32, i32
  }
}

</mosaic_0001>

<llo_original>
// kernel: net_head_forward.1
$region0: #{net_head_forward.1}
  #allocation0 [shape = 'u32[]', space=smem, size = 0x4, offset = 0x4, fixed_abs, tag = 'smem constant byte address 0x4 - core index']
  #allocation1 [shape = 'u32[144,128]{1,0:T(1,128)}', space=vmem, size = 0x12000, scoped, tag = 'internal scratch']
  %s0 = inlined_call_operand.vmem [shape: f32[70,32], index: 0, kind: input, shape index: {}]
  %s1 = inlined_call_operand.vmem [shape: f32[70,32], index: 1, kind: input, shape index: {}]
  %s2 = inlined_call_operand.vmem [shape: f32[32,10], index: 2, kind: input, shape index: {}]
  %s3 = inlined_call_operand.vmem [shape: f32[32,32], index: 3, kind: input, shape index: {}]
  %s4 = inlined_call_operand.vmem [shape: f32[32,1], index: 4, kind: input, shape index: {}]
  %s5 = inlined_call_operand.vmem [shape: f32[32,10], index: 5, kind: input, shape index: {}]
  %s6 = inlined_call_operand.vmem [shape: f32[1,10], index: 6, kind: input, shape index: {}]
  %s7 = inlined_call_operand.vmem [shape: f32[70,10], index: 7, kind: output, shape index: {}]
  %s8 = sld [smem:[#allocation0]]
  $region38: #{net_head_forward.1} parent=0
    _
  %s10 = ssub.s32 1, %s8
  %s11 = scalar_select 0, %s10, %s8
  // Predicated region
  $region2: #{net_head_forward.1} parent=0 // pred_check
    _
  $region3: #{net_head_forward.1} parent=0 // pred_check_branch
    %13 = sbr.rel (0) target = $region5
  $region4: #{net_head_forward.1} parent=0 // pred_region
    _
  $region5: #{net_head_forward.1} parent=0 // pred_fallthru
    _
  // Predicated region
  $region6: #{net_head_forward.1} parent=0 // pred_check
    _
  $region7: #{net_head_forward.1} parent=0 // pred_check_branch
    %15 = sbr.rel (0) target = $region9
  $region8: #{net_head_forward.1} parent=0 // pred_region
    _
  $region9: #{net_head_forward.1} parent=0 // pred_fallthru
    _
  // Predicated region
  $region10: #{net_head_forward.1} parent=0 // pred_check
    _
  $region11: #{net_head_forward.1} parent=0 // pred_check_branch
    %17 = sbr.rel (0) target = $region13
  $region12: #{net_head_forward.1} parent=0 // pred_region
    _
  $region13: #{net_head_forward.1} parent=0 // pred_fallthru
    _
  // Predicated region
  $region14: #{net_head_forward.1} parent=0 // pred_check
    _
  $region15: #{net_head_forward.1} parent=0 // pred_check_branch
    %19 = sbr.rel (0) target = $region17
  $region16: #{net_head_forward.1} parent=0 // pred_region
    _
  $region17: #{net_head_forward.1} parent=0 // pred_fallthru
    _
  // Predicated region
  $region18: #{net_head_forward.1} parent=0 // pred_check
    _
  $region19: #{net_head_forward.1} parent=0 // pred_check_branch
    %21 = sbr.rel (0) target = $region21
  $region20: #{net_head_forward.1} parent=0 // pred_region
    _
  $region21: #{net_head_forward.1} parent=0 // pred_fallthru
    _
  // Predicated region
  $region22: #{net_head_forward.1} parent=0 // pred_check
    _
  $region23: #{net_head_forward.1} parent=0 // pred_check_branch
    %23 = sbr.rel (0) target = $region25
  $region24: #{net_head_forward.1} parent=0 // pred_region
    _
  $region25: #{net_head_forward.1} parent=0 // pred_fallthru
    _
  // Predicated region
  $region26: #{net_head_forward.1} parent=0 // pred_check
    _
  $region27: #{net_head_forward.1} parent=0 // pred_check_branch
    %25 = sbr.rel (0) target = $region29
  $region28: #{net_head_forward.1} parent=0 // pred_region
    _
  $region29: #{net_head_forward.1} parent=0 // pred_fallthru
    _
  %v26 = vld [vmem:[%s3] sm:$0xff]
  %v27 = vld [vmem:[%s3 + $0x8] sm:$0xff]
  %v28 = vld [vmem:[%s3 + $0x10] sm:$0xff]
  %v29 = vld [vmem:[%s3 + $0x18] sm:$0xff]
  %v30 = vld [vmem:[%s2] sm:$0xff]
  %v31 = vld [vmem:[%s2 + $0x8] sm:$0xff]
  %v32 = vld [vmem:[%s2 + $0x10] sm:$0xff]
  %v33 = vld [vmem:[%s2 + $0x18] sm:$0xff]
  %v34 = vld [vmem:[%s4] sm:$0xff]
  %v35 = vld [vmem:[%s4 + $0x8] sm:$0xff]
  %v36 = vld [vmem:[%s4 + $0x10] sm:$0xff]
  %v37 = vld [vmem:[%s4 + $0x18] sm:$0xff]
  %39 = vset.pattern.permute.xlu0 0
  %40 = vperm.xlu0 %39, %v34
  %v41 = vpop.permute.xlu0 %40
  %44 = vset.pattern.permute.xlu0 0
  %45 = vperm.xlu0 %44, %v35
  %v46 = vpop.permute.xlu0 %45
  %49 = vset.pattern.permute.xlu0 0
  %50 = vperm.xlu0 %49, %v36
  %v51 = vpop.permute.xlu0 %50
  %54 = vset.pattern.permute.xlu0 0
  %55 = vperm.xlu0 %54, %v37
  %v56 = vpop.permute.xlu0 %55
  %vm58 = vcmask 261120
  %v60 = vsel %vm58, %v26, 0
  %v63 = vsel %vm58, %v27, 0
  %v66 = vsel %vm58, %v28, 0
  %v69 = vsel %vm58, %v29, 0
  %71 = vmatprep.subr.mxu0 0.0
  %72 = vmatpush1.msra.mxu0 0.0
  %73 = vmatprep.subr.mxu0 0.0
  %74 = vmatpush1.msra.mxu0 0.0
  %75 = vmatprep.subr.mxu0 0.0
  %76 = vmatpush1.msra.mxu0 0.0
  %77 = vmatprep.subr.mxu0 0.0
  %78 = vmatpush1.msra.mxu0 0.0
  %79 = vmatprep.subr.mxu0 0.0
  %80 = vmatpush1.msra.mxu0 0.0
  %81 = vmatprep.subr.mxu0 0.0
  %82 = vmatpush1.msra.mxu0 0.0
  %83 = vmatprep.subr.mxu0 0.0
  %84 = vmatpush1.msra.mxu0 0.0
  %85 = vmatprep.subr.mxu0 0.0
  %86 = vmatpush1.msra.mxu0 0.0
  %87 = vmatprep.subr.mxu0 0.0
  %88 = vmatpush1.msra.mxu0 0.0
  %89 = vmatprep.subr.mxu0 0.0
  %90 = vmatpush1.msra.mxu0 0.0
  %91 = vmatprep.subr.mxu0 0.0
  %92 = vmatpush1.msra.mxu0 0.0
  %93 = vmatprep.subr.mxu0 0.0
  %94 = vmatpush1.msra.mxu0 0.0
  %95 = vmatprep.subr.mxu0 0.0
  %96 = vmatpush1.msra.mxu0 %v33
  %97 = vmatprep.subr.mxu0 0.0
  %98 = vmatpush1.msra.mxu0 %v32
  %99 = vmatprep.subr.mxu0 0.0
  %100 = vmatpush1.msra.mxu0 %v31
  %101 = vmatprep.subr.mxu0 0.0
  %102 = vmatpush1.msra.mxu0 %v30
  %103 = vmatprep.subr.mxu0 0.0
  %104 = vmatpush2.msra.mxu0 0.0
  %105 = vmatprep.subr.mxu0 0.0
  %106 = vmatpush2.msra.mxu0 0.0
  %107 = vmatprep.subr.mxu0 0.0
  %108 = vmatpush2.msra.mxu0 0.0
  %109 = vmatprep.subr.mxu0 0.0
  %110 = vmatpush2.msra.mxu0 0.0
  %111 = vmatprep.subr.mxu0 0.0
  %112 = vmatpush2.msra.mxu0 0.0
  %113 = vmatprep.subr.mxu0 0.0
  %114 = vmatpush2.msra.mxu0 0.0
  %115 = vmatprep.subr.mxu0 0.0
  %116 = vmatpush2.msra.mxu0 0.0
  %117 = vmatprep.subr.mxu0 0.0
  %118 = vmatpush2.msra.mxu0 0.0
  %119 = vmatprep.subr.mxu0 0.0
  %120 = vmatpush2.msra.mxu0 0.0
  %121 = vmatprep.subr.mxu0 0.0
  %122 = vmatpush2.msra.mxu0 0.0
  %123 = vmatprep.subr.mxu0 0.0
  %124 = vmatpush2.msra.mxu0 0.0
  %125 = vmatprep.subr.mxu0 0.0
  %126 = vmatpush2.msra.mxu0 0.0
  %127 = vmatprep.subr.mxu0 0.0
  %128 = vmatpush2.msra.mxu0 0.0
  %129 = vmatprep.subr.mxu0 0.0
  %130 = vmatpush2.msra.mxu0 0.0
  %131 = vmatprep.subr.mxu0 0.0
  %132 = vmatpush2.msra.mxu0 0.0
  %133 = vmatprep.subr.mxu0 0.0
  %134 = vmatpush2.msra.mxu0 0.0
  %135 = vmatprep.mubr.f32.mxu0 0.0
  %136 = vmatmul.mubr.f32.gmra.mxu0 %v60
  %v137 = vpop.f32.mrf.mxu0
  %v138 = vadd.f32 %v41, %v137
  %v139 = vpop.f32.mrf.mxu0
  %140 = vmatprep.mubr.f32.mxu0 0.0
  %141 = vmatmul.mubr.f32.gmra.mxu0 %v63
  %v142 = vpop.f32.mrf.mxu0
  %v143 = vadd.f32 %v46, %v142
  %v144 = vpop.f32.mrf.mxu0
  %145 = vmatprep.mubr.f32.mxu0 0.0
  %146 = vmatmul.mubr.f32.gmra.mxu0 %v66
  %v147 = vpop.f32.mrf.mxu0
  %v148 = vadd.f32 %v51, %v147
  %v149 = vpop.f32.mrf.mxu0
  %150 = vmatprep.mubr.f32.mxu0 0.0
  %151 = vmatmul.mubr.f32.gmra.mxu0 %v69
  %v152 = vpop.f32.mrf.mxu0
  %v153 = vadd.f32 %v56, %v152
  %v154 = vpop.f32.mrf.mxu0
  %155 = vdwg.mxu0
  %v156 = vxor.u32 %v138, 2147483648
  %v157 = vxor.u32 %v143, 2147483648
  %v158 = vxor.u32 %v148, 2147483648
  %v159 = vxor.u32 %v153, 2147483648
  %v160 = vmul.f32 %v156, 1.442695
  %v161 = vpow.pop %v160
  %v162 = vmul.f32 %v157, 1.442695
  %v163 = vpow.pop %v162
  %v164 = vmul.f32 %v158, 1.442695
  %v165 = vpow.pop %v164
  %v166 = vmul.f32 %v159, 1.442695
  %v167 = vpow.pop %v166
  %v168 = vadd.f32 %v161, 1.0
  %v169 = vadd.f32 %v163, 1.0
  %v170 = vadd.f32 %v165, 1.0
  %v171 = vadd.f32 %v167, 1.0
  %v172 = vrcp.pop %v168
  %v173 = vmul.f32 1.0, %v172
  %v174 = vrcp.pop %v169
  %v175 = vmul.f32 1.0, %v174
  %v176 = vrcp.pop %v170
  %v177 = vmul.f32 1.0, %v176
  %v178 = vrcp.pop %v171
  %v179 = vmul.f32 1.0, %v178
  %v180 = vld [vmem:[%s5] sm:$0xff]
  %v181 = vld [vmem:[%s5 + $0x8] sm:$0xff]
  %v182 = vld [vmem:[%s5 + $0x10] sm:$0xff]
  %v183 = vld [vmem:[%s5 + $0x18] sm:$0xff]
  %v184 = vmul.f32 %v173, %v180
  %v185 = vmul.f32 %v175, %v181
  %v186 = vmul.f32 %v177, %v182
  %v187 = vmul.f32 %v179, %v183
  %v188 = vld [vmem:[%s0] sm:$0xff]
  %v189 = vld [vmem:[%s0 + $0x8] sm:$0xff]
  %v190 = vld [vmem:[%s0 + $0x10] sm:$0xff]
  %v191 = vld [vmem:[%s0 + $0x18] sm:$0xff]
  %v192 = vld [vmem:[%s0 + $0x20] sm:$0xff]
  %v193 = vld [vmem:[%s0 + $0x28] sm:$0xff]
  %v194 = vld [vmem:[%s0 + $0x30] sm:$0xff]
  %v195 = vld [vmem:[%s0 + $0x38] sm:$0xff]
  %v196 = vld [vmem:[%s0 + $0x40] sm:$0xff]
  %v197 = vld [vmem:[%s1] sm:$0xff]
  %v198 = vld [vmem:[%s1 + $0x8] sm:$0xff]
  %v199 = vld [vmem:[%s1 + $0x10] sm:$0xff]
  %v200 = vld [vmem:[%s1 + $0x18] sm:$0xff]
  %v201 = vld [vmem:[%s1 + $0x20] sm:$0xff]
  %v202 = vld [vmem:[%s1 + $0x28] sm:$0xff]
  %v203 = vld [vmem:[%s1 + $0x30] sm:$0xff]
  %v204 = vld [vmem:[%s1 + $0x38] sm:$0xff]
  %v205 = vld [vmem:[%s1 + $0x40] sm:$0xff]
  %v206 = vxor.u32 %v197, 2147483648
  %v207 = vxor.u32 %v198, 2147483648
  %v208 = vxor.u32 %v199, 2147483648
  %v209 = vxor.u32 %v200, 2147483648
  %v210 = vxor.u32 %v201, 2147483648
  %v211 = vxor.u32 %v202, 2147483648
  %v212 = vxor.u32 %v203, 2147483648
  %v213 = vxor.u32 %v204, 2147483648
  %v214 = vxor.u32 %v205, 2147483648
  %v215 = vmul.f32 %v206, 1.442695
  %v216 = vpow.pop %v215
  %v217 = vmul.f32 %v207, 1.442695
  %v218 = vpow.pop %v217
  %v219 = vmul.f32 %v208, 1.442695
  %v220 = vpow.pop %v219
  %v221 = vmul.f32 %v209, 1.442695
  %v222 = vpow.pop %v221
  %v223 = vmul.f32 %v210, 1.442695
  %v224 = vpow.pop %v223
  %v225 = vmul.f32 %v211, 1.442695
  %v226 = vpow.pop %v225
  %v227 = vmul.f32 %v212, 1.442695
  %v228 = vpow.pop %v227
  %v229 = vmul.f32 %v213, 1.442695
  %v230 = vpow.pop %v229
  %v231 = vmul.f32 %v214, 1.442695
  %v232 = vpow.pop %v231
  %v233 = vadd.f32 %v216, 1.0
  %v234 = vadd.f32 %v218, 1.0
  %v235 = vadd.f32 %v220, 1.0
  %v236 = vadd.f32 %v222, 1.0
  %v237 = vadd.f32 %v224, 1.0
  %v238 = vadd.f32 %v226, 1.0
  %v239 = vadd.f32 %v228, 1.0
  %v240 = vadd.f32 %v230, 1.0
  %v241 = vadd.f32 %v232, 1.0
  %v242 = vrcp.pop %v233
  %v243 = vmul.f32 1.0, %v242
  %v244 = vrcp.pop %v234
  %v245 = vmul.f32 1.0, %v244
  %v246 = vrcp.pop %v235
  %v247 = vmul.f32 1.0, %v246
  %v248 = vrcp.pop %v236
  %v249 = vmul.f32 1.0, %v248
  %v250 = vrcp.pop %v237
  %v251 = vmul.f32 1.0, %v250
  %v252 = vrcp.pop %v238
  %v253 = vmul.f32 1.0, %v252
  %v254 = vrcp.pop %v239
  %v255 = vmul.f32 1.0, %v254
  %v256 = vrcp.pop %v240
  %v257 = vmul.f32 1.0, %v256
  %v258 = vrcp.pop %v241
  %v259 = vmul.f32 1.0, %v258
  %v260 = vmul.f32 %v188, %v243
  %v261 = vmul.f32 %v189, %v245
  %v262 = vmul.f32 %v190, %v247
  %v263 = vmul.f32 %v191, %v249
  %v264 = vmul.f32 %v192, %v251
  %v265 = vmul.f32 %v193, %v253
  %v266 = vmul.f32 %v194, %v255
  %v267 = vmul.f32 %v195, %v257
  %v268 = vmul.f32 %v196, %v259
  %v269 = vld [vmem:[%s6] sm:$0x1]
  %v271 = vlaneseq
  %v272 = vshrl.u32 %v271, 7
  %v273 = vsub.s32 0, %v272
  %v274 = vrot.slane %v269, %v273
  %v277 = vsel %vm58, %v260, 0
  %v280 = vsel %vm58, %v261, 0
  %v283 = vsel %vm58, %v262, 0
  %v286 = vsel %vm58, %v263, 0
  %v289 = vsel %vm58, %v264, 0
  %v292 = vsel %vm58, %v265, 0
  %v295 = vsel %vm58, %v266, 0
  %v298 = vsel %vm58, %v267, 0
  %v301 = vsel %vm58, %v268, 0
  %303 = vmatprep.subr.mxu0 0.0
  %304 = vmatpush1.msra.mxu0 0.0
  %305 = vmatprep.subr.mxu0 0.0
  %306 = vmatpush1.msra.mxu0 0.0
  %307 = vmatprep.subr.mxu0 0.0
  %308 = vmatpush1.msra.mxu0 0.0
  %309 = vmatprep.subr.mxu0 0.0
  %310 = vmatpush1.msra.mxu0 0.0
  %311 = vmatprep.subr.mxu0 0.0
  %312 = vmatpush1.msra.mxu0 0.0
  %313 = vmatprep.subr.mxu0 0.0
  %314 = vmatpush1.msra.mxu0 0.0
  %315 = vmatprep.subr.mxu0 0.0
  %316 = vmatpush1.msra.mxu0 0.0
  %317 = vmatprep.subr.mxu0 0.0
  %318 = vmatpush1.msra.mxu0 0.0
  %319 = vmatprep.subr.mxu0 0.0
  %320 = vmatpush1.msra.mxu0 0.0
  %321 = vmatprep.subr.mxu0 0.0
  %322 = vmatpush1.msra.mxu0 0.0
  %323 = vmatprep.subr.mxu0 0.0
  %324 = vmatpush1.msra.mxu0 0.0
  %325 = vmatprep.subr.mxu0 0.0
  %326 = vmatpush1.msra.mxu0 0.0
  %327 = vmatprep.subr.mxu0 0.0
  %328 = vmatpush1.msra.mxu0 %v187
  %329 = vmatprep.subr.mxu0 0.0
  %330 = vmatpush1.msra.mxu0 %v186
  %331 = vmatprep.subr.mxu0 0.0
  %332 = vmatpush1.msra.mxu0 %v185
  %333 = vmatprep.subr.mxu0 0.0
  %334 = vmatpush1.msra.mxu0 %v184
  %335 = vmatprep.subr.mxu0 0.0
  %336 = vmatpush2.msra.mxu0 0.0
  %337 = vmatprep.subr.mxu0 0.0
  %338 = vmatpush2.msra.mxu0 0.0
  %339 = vmatprep.subr.mxu0 0.0
  %340 = vmatpush2.msra.mxu0 0.0
  %341 = vmatprep.subr.mxu0 0.0
  %342 = vmatpush2.msra.mxu0 0.0
  %343 = vmatprep.subr.mxu0 0.0
  %344 = vmatpush2.msra.mxu0 0.0
  %345 = vmatprep.subr.mxu0 0.0
  %346 = vmatpush2.msra.mxu0 0.0
  %347 = vmatprep.subr.mxu0 0.0
  %348 = vmatpush2.msra.mxu0 0.0
  %349 = vmatprep.subr.mxu0 0.0
  %350 = vmatpush2.msra.mxu0 0.0
  %351 = vmatprep.subr.mxu0 0.0
  %352 = vmatpush2.msra.mxu0 0.0
  %353 = vmatprep.subr.mxu0 0.0
  %354 = vmatpush2.msra.mxu0 0.0
  %355 = vmatprep.subr.mxu0 0.0
  %356 = vmatpush2.msra.mxu0 0.0
  %357 = vmatprep.subr.mxu0 0.0
  %358 = vmatpush2.msra.mxu0 0.0
  %359 = vmatprep.subr.mxu0 0.0
  %360 = vmatpush2.msra.mxu0 0.0
  %361 = vmatprep.subr.mxu0 0.0
  %362 = vmatpush2.msra.mxu0 0.0
  %363 = vmatprep.subr.mxu0 0.0
  %364 = vmatpush2.msra.mxu0 0.0
  %365 = vmatprep.subr.mxu0 0.0
  %366 = vmatpush2.msra.mxu0 0.0
  %367 = vmatprep.mubr.f32.mxu0 0.0
  %368 = vmatmul.mubr.f32.gmra.mxu0 %v277
  %v369 = vpop.f32.mrf.mxu0
  %v370 = vadd.f32 %v274, %v369
  %v371 = vpop.f32.mrf.mxu0
  %372 = vmatprep.mubr.f32.mxu0 0.0
  %373 = vmatmul.mubr.f32.gmra.mxu0 %v280
  %v374 = vpop.f32.mrf.mxu0
  %v375 = vadd.f32 %v274, %v374
  %v376 = vpop.f32.mrf.mxu0
  %377 = vmatprep.mubr.f32.mxu0 0.0
  %378 = vmatmul.mubr.f32.gmra.mxu0 %v283
  %v379 = vpop.f32.mrf.mxu0
  %v380 = vadd.f32 %v274, %v379
  %v381 = vpop.f32.mrf.mxu0
  %382 = vmatprep.mubr.f32.mxu0 0.0
  %383 = vmatmul.mubr.f32.gmra.mxu0 %v286
  %v384 = vpop.f32.mrf.mxu0
  %v385 = vadd.f32 %v274, %v384
  %v386 = vpop.f32.mrf.mxu0
  %387 = vmatprep.mubr.f32.mxu0 0.0
  %388 = vmatmul.mubr.f32.gmra.mxu0 %v289
  %v389 = vpop.f32.mrf.mxu0
  %v390 = vadd.f32 %v274, %v389
  %v391 = vpop.f32.mrf.mxu0
  %392 = vmatprep.mubr.f32.mxu0 0.0
  %393 = vmatmul.mubr.f32.gmra.mxu0 %v292
  %v394 = vpop.f32.mrf.mxu0
  %v395 = vadd.f32 %v274, %v394
  %v396 = vpop.f32.mrf.mxu0
  %397 = vmatprep.mubr.f32.mxu0 0.0
  %398 = vmatmul.mubr.f32.gmra.mxu0 %v295
  %v399 = vpop.f32.mrf.mxu0
  %v400 = vadd.f32 %v274, %v399
  %v401 = vpop.f32.mrf.mxu0
  %402 = vmatprep.mubr.f32.mxu0 0.0
  %403 = vmatmul.mubr.f32.gmra.mxu0 %v298
  %v404 = vpop.f32.mrf.mxu0
  %v405 = vadd.f32 %v274, %v404
  %v406 = vpop.f32.mrf.mxu0
  %407 = vmatprep.mubr.f32.mxu0 0.0
  %408 = vmatmul.mubr.f32.gmra.mxu0 %v301
  %v409 = vpop.f32.mrf.mxu0
  %v410 = vadd.f32 %v274, %v409
  %v411 = vpop.f32.mrf.mxu0
  %412 = vdwg.mxu0
  %v413 = vxor.u32 %v370, 2147483648
  %v414 = vxor.u32 %v375, 2147483648
  %v415 = vxor.u32 %v380, 2147483648
  %v416 = vxor.u32 %v385, 2147483648
  %v417 = vxor.u32 %v390, 2147483648
  %v418 = vxor.u32 %v395, 2147483648
  %v419 = vxor.u32 %v400, 2147483648
  %v420 = vxor.u32 %v405, 2147483648
  %v421 = vxor.u32 %v410, 2147483648
  %v422 = vmul.f32 %v413, 1.442695
  %v423 = vpow.pop %v422
  %v424 = vmul.f32 %v414, 1.442695
  %v425 = vpow.pop %v424
  %v426 = vmul.f32 %v415, 1.442695
  %v427 = vpow.pop %v426
  %v428 = vmul.f32 %v416, 1.442695
  %v429 = vpow.pop %v428
  %v430 = vmul.f32 %v417, 1.442695
  %v431 = vpow.pop %v430
  %v432 = vmul.f32 %v418, 1.442695
  %v433 = vpow.pop %v432
  %v434 = vmul.f32 %v419, 1.442695
  %v435 = vpow.pop %v434
  %v436 = vmul.f32 %v420, 1.442695
  %v437 = vpow.pop %v436
  %v438 = vmul.f32 %v421, 1.442695
  %v439 = vpow.pop %v438
  %v440 = vadd.f32 %v423, 1.0
  %v441 = vadd.f32 %v425, 1.0
  %v442 = vadd.f32 %v427, 1.0
  %v443 = vadd.f32 %v429, 1.0
  %v444 = vadd.f32 %v431, 1.0
  %v445 = vadd.f32 %v433, 1.0
  %v446 = vadd.f32 %v435, 1.0
  %v447 = vadd.f32 %v437, 1.0
  %v448 = vadd.f32 %v439, 1.0
  %v449 = vrcp.pop %v440
  %v450 = vmul.f32 1.0, %v449
  %v451 = vrcp.pop %v441
  %v452 = vmul.f32 1.0, %v451
  %v453 = vrcp.pop %v442
  %v454 = vmul.f32 1.0, %v453
  %v455 = vrcp.pop %v443
  %v456 = vmul.f32 1.0, %v455
  %v457 = vrcp.pop %v444
  %v458 = vmul.f32 1.0, %v457
  %v459 = vrcp.pop %v445
  %v460 = vmul.f32 1.0, %v459
  %v461 = vrcp.pop %v446
  %v462 = vmul.f32 1.0, %v461
  %v463 = vrcp.pop %v447
  %v464 = vmul.f32 1.0, %v463
  %v465 = vrcp.pop %v448
  %v466 = vmul.f32 1.0, %v465
  %vm467 = vcmask 80896
  %468 = vst.msk [vmem:[%s7] sm:$0xff] %vm467, %v450
  %469 = vst.msk [vmem:[%s7 + $0x8] sm:$0xff] %vm467, %v452
  %470 = vst.msk [vmem:[%s7 + $0x10] sm:$0xff] %vm467, %v454
  %471 = vst.msk [vmem:[%s7 + $0x18] sm:$0xff] %vm467, %v456
  %472 = vst.msk [vmem:[%s7 + $0x20] sm:$0xff] %vm467, %v458
  %473 = vst.msk [vmem:[%s7 + $0x28] sm:$0xff] %vm467, %v460
  %474 = vst.msk [vmem:[%s7 + $0x30] sm:$0xff] %vm467, %v462
  %475 = vst.msk [vmem:[%s7 + $0x38] sm:$0xff] %vm467, %v464
  %476 = vst.msk [vmem:[%s7 + $0x40] sm:$0xff] %vm467, %v466
  // Predicated region
  $region30: #{net_head_forward.1} parent=0 // pred_check
    _
  $region31: #{net_head_forward.1} parent=0 // pred_check_branch
    %478 = sbr.rel (0) target = $region33
  $region32: #{net_head_forward.1} parent=0 // pred_region
    _
  $region33: #{net_head_forward.1} parent=0 // pred_fallthru
    _
  // Predicated region
  $region34: #{net_head_forward.1} parent=0 // pred_check
    _
  $region35: #{net_head_forward.1} parent=0 // pred_check_branch
    %480 = sbr.rel (0) target = $region37
  $region36: #{net_head_forward.1} parent=0 // pred_region
    _
  $region37: #{net_head_forward.1} parent=0 // pred_fallthru
    _

</llo_original>
